<compile_context>
chip_gen: v7x
topology: tpu7x:2x2x1
jax: 0.10.0
libtpu: 0.0.40
codegen_flags: <defaults>
</compile_context>

<pallas_src>
import functools

import jax
import jax.numpy as jnp
from jax.experimental import pallas as pl
from jax.experimental.pallas import tpu as pltpu


# ----------------------------- fused Pallas kernel ------------------------------


def fused_forward_kernel(x_ref, wconv_ref, bconv_ref, tmask_ref, wfc_ref, bfc_ref, o_ref,
                         *, batch, seq_len, embed_dim, k_max, merge_taps):
    """conv(x3, both channels) + max-pool + bias + ReLU + split FC + log_softmax.

    x_ref:     (R_pad, E)        flat rows: [ch1 b0 t0..tL-1, ..., ch2 b0 ..., slack rows]
    wconv_ref: (K_max*E, Cp)     merged conv weights, flattened taps, Cp = pad(3C, 128)
    bconv_ref: (1, Cp)           merged conv biases (0 in pad columns)
    tmask_ref: (L, Cp)           additive mask: 0 where t < L-K+1 for that column, else -1e30
    wfc_ref:   (2, Cp, O)        fc weight split per embedding channel (0 in pad rows)
    bfc_ref:   (1, O)            fc bias
    o_ref:     (B, O)            log-probabilities
    """
    rows = 2 * batch * seq_len

    if merge_taps:
        # Small-E path: build the (rows, K_max*E) sliding window via static shifted slices and
        # do ONE deep-contraction MXU matmul (f32 accumulate).
        taps = [x_ref[pl.ds(k, rows), :] for k in range(k_max)]           # static shifts
        win = jnp.concatenate(taps, axis=1)                               # (rows, K_max*E)
        acc = jnp.dot(win, wconv_ref[...], preferred_element_type=jnp.float32)   # (rows, Cp)
    else:
        # Large-E path: K_max shifted, accumulated matmuls (contraction already MXU-deep).
        acc = jnp.dot(x_ref[pl.ds(0, rows), :], wconv_ref[pl.ds(0, embed_dim), :],
                      preferred_element_type=jnp.float32)
        for k in range(1, k_max):                                         # static unroll
            acc = acc + jnp.dot(x_ref[pl.ds(k, rows), :],
                                wconv_ref[pl.ds(k * embed_dim, embed_dim), :],
                                preferred_element_type=jnp.float32)

    c_pad = acc.shape[1]

    # Masked global max-pool over time: one layout-preserving reshape (L is a multiple of 8),
    # one broadcast mask add, one reduce over axis 1.
    acc3 = acc.reshape(2 * batch, seq_len, c_pad) + tmask_ref[...][None, :, :]
    pooled = jnp.max(acc3, axis=1)                                        # (2B, Cp)

    # Bias + ReLU AFTER the pool: max_t(relu(s+b)) == relu(max_t(s)+b) since b is t-invariant.
    pooled = jnp.maximum(pooled + bconv_ref[...], 0.0)

    # FC without any lane concat: per-channel weight slabs, accumulated in the MXU result path.
    logits = (jnp.dot(pooled[:batch, :], wfc_ref[0], preferred_element_type=jnp.float32)
              + jnp.dot(pooled[batch:, :], wfc_ref[1], preferred_element_type=jnp.float32)
              + bfc_ref[...])                                             # (B, O)

    # Numerically stable log_softmax over classes (lane axis).
    mx = jnp.max(logits, axis=-1, keepdims=True)
    lse = mx + jnp.log(jnp.sum(jnp.exp(logits - mx), axis=-1, keepdims=True))
    o_ref[...] = logits - lse


# ----------------------------- wrapper -------------------------------------------


def fused_forward(x_flat, wconv_flat, bconv, tmask, wfc, bfc, *,
                  batch, seq_len, embed_dim, k_max):
    out_dim = wfc.shape[2]
    merge_taps = embed_dim < 256   # merged deep-contraction matmul pays off when E << 128-256
    kernel = functools.partial(fused_forward_kernel, batch=batch, seq_len=seq_len,
                               embed_dim=embed_dim, k_max=k_max, merge_taps=merge_taps)
    return pl.pallas_call(
        kernel,
        out_shape=jax.ShapeDtypeStruct((batch, out_dim), jnp.float32),
        grid=(1,),
        in_specs=[
            pl.BlockSpec(x_flat.shape, lambda i: (0, 0)),
            pl.BlockSpec(wconv_flat.shape, lambda i: (0, 0)),
            pl.BlockSpec(bconv.shape, lambda i: (0, 0)),
            pl.BlockSpec(tmask.shape, lambda i: (0, 0)),
            pl.BlockSpec(wfc.shape, lambda i: (0, 0, 0)),
            pl.BlockSpec(bfc.shape, lambda i: (0, 0)),
        ],
        out_specs=pl.BlockSpec((batch, out_dim), lambda i: (0, 0)),
        compiler_params=pltpu.CompilerParams(
            dimension_semantics=("arbitrary",),
            vmem_limit_bytes=32 * 1024 * 1024),   # re-derive per generation at production sizes
    )(x_flat, wconv_flat, bconv, tmask, wfc, bfc)


# ----------------------------- parameter packing ------------------------------------


def pack_conv_params(params, kernel_sizes, seq_len, embed_dim, kernel_dim):
    """Merge per-K conv weights/biases along the output-channel axis, pad channels to a
    multiple of 128 lanes, flatten the tap axis, and build the additive time mask."""
    k_max = max(kernel_sizes)
    n = len(kernel_sizes)
    c_total = n * kernel_dim
    c_pad = max(128, ((c_total + 127) // 128) * 128)

    wconv = jnp.zeros((k_max, embed_dim, c_pad), jnp.float32)
    bconv = jnp.zeros((1, c_pad), jnp.float32)
    tmask = jnp.full((seq_len, c_pad), -1e30, jnp.float32)    # pad columns fully masked

    for j, K in enumerate(kernel_sizes):
        w = params[f"conv{K}_w"]                              # (C, K, E) == PyTorch (C,1,K,E)
        w = jnp.transpose(w, (1, 2, 0))                       # (K, E, C)
        lo, hi = j * kernel_dim, (j + 1) * kernel_dim
        wconv = wconv.at[:K, :, lo:hi].set(w)                 # taps >= K stay zero
        bconv = bconv.at[:, lo:hi].set(params[f"conv{K}_b"])
        valid_t = seq_len - K + 1
        col = jnp.where(jnp.arange(seq_len) < valid_t, 0.0, -1e30).astype(jnp.float32)
        tmask = tmask.at[:, lo:hi].set(jnp.broadcast_to(col[:, None], (seq_len, kernel_dim)))

    wconv_flat = wconv.reshape(k_max * embed_dim, c_pad)      # (K_max*E, Cp)
    return wconv_flat, bconv, tmask, c_pad, c_total


def pack_fc_params(fc_w, c_total, c_pad):
    """Split the (2*3C, O) fc weight into per-channel (Cp, O) slabs (zero in pad rows)."""
    out_dim = fc_w.shape[1]
    wfc = jnp.zeros((2, c_pad, out_dim), jnp.float32)
    wfc = wfc.at[0, :c_total, :].set(fc_w[:c_total, :])
    wfc = wfc.at[1, :c_total, :].set(fc_w[c_total:, :])
    return wfc


# ----------------------------- model glue ------------------------------------------


def cnn_classifier_2channel_forward(params, ids1, ids2, kernel_sizes):
    """Mirrors CNNClassifier_2channel.forward in eval mode, fused into one Pallas kernel."""
    B, L = ids1.shape
    E = params["embed1"].shape[1]
    C = params[f"conv{kernel_sizes[0]}_w"].shape[0]
    k_max = max(kernel_sizes)
    vocab1 = params["embed1"].shape[0]

    wconv_flat, bconv, tmask, c_pad, c_total = pack_conv_params(params, kernel_sizes, L, E, C)
    wfc = pack_fc_params(params["fc_w"], c_total, c_pad)
    bfc = params["fc_b"]                                      # (1, O)

    # Single fused embedding gather: one merged table (ids2 offset by vocab1); pad the ID
    # vector (not the activations) so jnp.take yields the flat (rows_pad, E) slab directly.
    # Slack-row content never matters: taps with nonzero weight never read past valid rows
    # for unmasked time positions, and zero-weight taps contribute 0 to the matmul.
    embed_cat = jnp.concatenate([params["embed1"], params["embed2"]], axis=0)
    ids_flat = jnp.concatenate([ids1.reshape(-1), ids2.reshape(-1) + vocab1], axis=0)
    rows = 2 * B * L
    rows_pad = ((rows + k_max - 1 + 7) // 8) * 8              # shifted-read slack, 8-aligned
    ids_flat = jnp.pad(ids_flat, (0, rows_pad - rows))
    x_flat = jnp.take(embed_cat, ids_flat, axis=0)            # (rows_pad, E)

    # Dropout skipped: eval-mode forward (self.training == False).
    return fused_forward(x_flat, wconv_flat, bconv, tmask, wfc, bfc,
                         batch=B, seq_len=L, embed_dim=E, k_max=k_max)


# ----------------------------- pure-JAX reference -----------------------------------


def _im2col(x, K):
    B, L, E = x.shape
    T = L - K + 1
    wins = jnp.stack([x[:, t:t + K, :] for t in range(T)], axis=1)   # (B, T, K, E)
    return wins.reshape(B, T, K * E)


def reference_forward(params, ids1, ids2, kernel_sizes):
    x1 = jnp.take(params["embed1"], ids1, axis=0)
    x2 = jnp.take(params["embed2"], ids2, axis=0)
    feats = []
    for x in (x1, x2):
        ch = []
        for K in kernel_sizes:
            C = params[f"conv{K}_w"].shape[0]
            w_flat = params[f"conv{K}_w"].reshape(C, -1).T            # (K*E, C)
            s = jnp.einsum("btk,kc->btc", _im2col(x, K), w_flat) + params[f"conv{K}_b"]
            ch.append(jnp.max(jnp.maximum(s, 0.0), axis=1))
        feats.append(jnp.concatenate(ch, axis=1))
    concated = jnp.concatenate(feats, axis=1)
    logits = concated @ params["fc_w"] + params["fc_b"]
    return jax.nn.log_softmax(logits, axis=1)


# ----------------------------- main ---------------------------------------------------


if __name__ == "__main__":
    # Small, module-consistent shapes.
    B, L, E = 2, 16, 32          # batch, sequence length, embedding dim (L multiple of 8)
    vocab1, vocab2 = 50, 50      # embed1.shape[0], embed2.shape[0]
    C = 16                       # kernel_dim (scaled down from 200)
    kernel_sizes = (3, 4, 5)
    O = 8                        # output_size

    key = jax.random.PRNGKey(0)
    keys = jax.random.split(key, 12)

    params = {
        "embed1": 0.1 * jax.random.normal(keys[0], (vocab1, E), jnp.float32),
        "embed2": 0.1 * jax.random.normal(keys[1], (vocab2, E), jnp.float32),
        "fc_w": 0.1 * jax.random.normal(keys[2], (2 * len(kernel_sizes) * C, O), jnp.float32),
        "fc_b": 0.1 * jax.random.normal(keys[3], (1, O), jnp.float32),
    }
    for i, K in enumerate(kernel_sizes):
        # PyTorch Conv2d weight is (C, 1, K, E); stored squeezed as (C, K, E).
        params[f"conv{K}_w"] = 0.1 * jax.random.normal(keys[4 + 2 * i], (C, K, E), jnp.float32)
        params[f"conv{K}_b"] = 0.1 * jax.random.normal(keys[5 + 2 * i], (1, C), jnp.float32)

    ids1 = jax.random.randint(keys[10], (B, L), 0, vocab1, dtype=jnp.int32)
    ids2 = jax.random.randint(keys[11], (B, L), 0, vocab2, dtype=jnp.int32)

    out = cnn_classifier_2channel_forward(params, ids1, ids2, kernel_sizes)
    out = jax.block_until_ready(out)

    ref = jax.block_until_ready(reference_forward(params, ids1, ids2, kernel_sizes))
    assert out.shape == (B, O)
    # Tolerance covers MXU default f32 matmul precision / summation-order differences.
    assert jnp.allclose(out, ref, atol=1e-3, rtol=1e-3), "Pallas output mismatch vs reference"

    print("KERNEL_OK")
</pallas_src>

<mosaic_0001>
module attributes {stable_mosaic.version = 11 : i64} {
  func.func @fused_forward_kernel(%arg0: i32, %arg1: memref<72x32xf32, #tpu.memory_space<vmem>>, %arg2: memref<160x128xf32, #tpu.memory_space<vmem>>, %arg3: memref<1x128xf32, #tpu.memory_space<vmem>>, %arg4: memref<16x128xf32, #tpu.memory_space<vmem>>, %arg5: memref<2x128x8xf32, #tpu.memory_space<vmem>>, %arg6: memref<1x8xf32, #tpu.memory_space<vmem>>, %arg7: memref<2x8xf32, #tpu.memory_space<vmem>>) attributes {dimension_semantics = [#tpu.dimension_semantics<arbitrary>], iteration_bounds = array<i64: 1>, scalar_prefetch = 0 : i64, scratch_operands = 0 : i64, tpu.core_type = #tpu.core_type<tc>, window_params = [{pipeline_mode = #tpu.pipeline_mode<synchronous>, transform_indices = @transform_0, window_bounds = array<i64: 72, 32>}, {pipeline_mode = #tpu.pipeline_mode<synchronous>, transform_indices = @transform_1, window_bounds = array<i64: 160, 128>}, {pipeline_mode = #tpu.pipeline_mode<synchronous>, transform_indices = @transform_2, window_bounds = array<i64: 1, 128>}, {pipeline_mode = #tpu.pipeline_mode<synchronous>, transform_indices = @transform_3, window_bounds = array<i64: 16, 128>}, {pipeline_mode = #tpu.pipeline_mode<synchronous>, transform_indices = @transform_4, window_bounds = array<i64: 2, 128, 8>}, {pipeline_mode = #tpu.pipeline_mode<synchronous>, transform_indices = @transform_5, window_bounds = array<i64: 1, 8>}, {pipeline_mode = #tpu.pipeline_mode<synchronous>, transform_indices = @transform_6, window_bounds = array<i64: 2, 8>}]} {
    %c0 = arith.constant 0 : index
    %c0_0 = arith.constant 0 : index
    %0 = vector.load %arg1[%c0, %c0_0] : memref<72x32xf32, #tpu.memory_space<vmem>>, vector<64x32xf32>
    %c1 = arith.constant 1 : index
    %c0_1 = arith.constant 0 : index
    %1 = vector.load %arg1[%c1, %c0_1] : memref<72x32xf32, #tpu.memory_space<vmem>>, vector<64x32xf32>
    %c2 = arith.constant 2 : index
    %c0_2 = arith.constant 0 : index
    %2 = vector.load %arg1[%c2, %c0_2] : memref<72x32xf32, #tpu.memory_space<vmem>>, vector<64x32xf32>
    %c3 = arith.constant 3 : index
    %c0_3 = arith.constant 0 : index
    %3 = vector.load %arg1[%c3, %c0_3] : memref<72x32xf32, #tpu.memory_space<vmem>>, vector<64x32xf32>
    %c4 = arith.constant 4 : index
    %c0_4 = arith.constant 0 : index
    %4 = vector.load %arg1[%c4, %c0_4] : memref<72x32xf32, #tpu.memory_space<vmem>>, vector<64x32xf32>
    %5 = tpu.concatenate %0, %1, %2, %3, %4 in 1 : vector<64x32xf32>, vector<64x32xf32>, vector<64x32xf32>, vector<64x32xf32>, vector<64x32xf32> -> vector<64x160xf32>
    %c0_5 = arith.constant 0 : index
    %c0_6 = arith.constant 0 : index
    %6 = vector.load %arg2[%c0_5, %c0_6] : memref<160x128xf32, #tpu.memory_space<vmem>>, vector<160x128xf32>
    %cst = arith.constant dense<0.000000e+00> : vector<64x128xf32>
    %7 = tpu.matmul %5, %6, %cst {dimension_numbers = #tpu.dot_dimension_numbers<[1], [0], [0], [1], [0, 0, 1, 1], [], []>} : vector<64x160xf32>, vector<160x128xf32>, vector<64x128xf32> -> vector<64x128xf32>
    %8 = vector.shape_cast %7 : vector<64x128xf32> to vector<4x16x128xf32>
    %c0_7 = arith.constant 0 : index
    %c0_8 = arith.constant 0 : index
    %9 = vector.load %arg4[%c0_7, %c0_8] : memref<16x128xf32, #tpu.memory_space<vmem>>, vector<16x128xf32>
    %10 = vector.shape_cast %9 : vector<16x128xf32> to vector<1x16x128xf32>
    %11 = vector.broadcast %10 : vector<1x16x128xf32> to vector<4x16x128xf32>
    %12 = arith.addf %8, %11 : vector<4x16x128xf32>
    %cst_9 = arith.constant dense<0xFF800000> : vector<4x128xf32>
    %13 = vector.multi_reduction <maximumf>, %12, %cst_9 [1] : vector<4x16x128xf32> to vector<4x128xf32>
    %c0_10 = arith.constant 0 : index
    %c0_11 = arith.constant 0 : index
    %14 = vector.load %arg3[%c0_10, %c0_11] : memref<1x128xf32, #tpu.memory_space<vmem>>, vector<1x128xf32>
    %15 = vector.broadcast %14 : vector<1x128xf32> to vector<4x128xf32>
    %16 = arith.addf %13, %15 : vector<4x128xf32>
    %cst_12 = arith.constant 0.000000e+00 : f32
    %17 = vector.broadcast %cst_12 : f32 to vector<4x128xf32>
    %18 = arith.maximumf %16, %17 : vector<4x128xf32>
    %19 = vector.extract_strided_slice %18 {offsets = [0, 0], sizes = [2, 128], strides = [1, 1]} : vector<4x128xf32> to vector<2x128xf32>
    %c0_13 = arith.constant 0 : index
    %c0_14 = arith.constant 0 : index
    %c0_15 = arith.constant 0 : index
    %20 = vector.load %arg5[%c0_13, %c0_14, %c0_15] : memref<2x128x8xf32, #tpu.memory_space<vmem>>, vector<1x128x8xf32>
    %21 = vector.shape_cast %20 : vector<1x128x8xf32> to vector<128x8xf32>
    %cst_16 = arith.constant dense<0.000000e+00> : vector<2x8xf32>
    %22 = tpu.matmul %19, %21, %cst_16 {dimension_numbers = #tpu.dot_dimension_numbers<[1], [0], [0], [1], [0, 0, 1, 1], [], []>} : vector<2x128xf32>, vector<128x8xf32>, vector<2x8xf32> -> vector<2x8xf32>
    %23 = vector.extract_strided_slice %18 {offsets = [2, 0], sizes = [2, 128], strides = [1, 1]} : vector<4x128xf32> to vector<2x128xf32>
    %c1_17 = arith.constant 1 : index
    %c0_18 = arith.constant 0 : index
    %c0_19 = arith.constant 0 : index
    %24 = vector.load %arg5[%c1_17, %c0_18, %c0_19] : memref<2x128x8xf32, #tpu.memory_space<vmem>>, vector<1x128x8xf32>
    %25 = vector.shape_cast %24 : vector<1x128x8xf32> to vector<128x8xf32>
    %cst_20 = arith.constant dense<0.000000e+00> : vector<2x8xf32>
    %26 = tpu.matmul %23, %25, %cst_20 {dimension_numbers = #tpu.dot_dimension_numbers<[1], [0], [0], [1], [0, 0, 1, 1], [], []>} : vector<2x128xf32>, vector<128x8xf32>, vector<2x8xf32> -> vector<2x8xf32>
    %27 = arith.addf %22, %26 : vector<2x8xf32>
    %c0_21 = arith.constant 0 : index
    %c0_22 = arith.constant 0 : index
    %28 = vector.load %arg6[%c0_21, %c0_22] : memref<1x8xf32, #tpu.memory_space<vmem>>, vector<1x8xf32>
    %29 = vector.broadcast %28 : vector<1x8xf32> to vector<2x8xf32>
    %30 = arith.addf %27, %29 : vector<2x8xf32>
    %cst_23 = arith.constant dense<0xFF800000> : vector<2xf32>
    %31 = vector.multi_reduction <maximumf>, %30, %cst_23 [1] : vector<2x8xf32> to vector<2xf32>
    %32 = vector.shape_cast %31 : vector<2xf32> to vector<2x1xf32>
    %33 = vector.broadcast %32 : vector<2x1xf32> to vector<2x8xf32>
    %34 = arith.subf %30, %33 : vector<2x8xf32>
    %35 = math.exp %34 : vector<2x8xf32>
    %cst_24 = arith.constant dense<0.000000e+00> : vector<2xf32>
    %36 = vector.multi_reduction <add>, %35, %cst_24 [1] : vector<2x8xf32> to vector<2xf32>
    %37 = vector.shape_cast %36 : vector<2xf32> to vector<2x1xf32>
    %38 = math.log %37 : vector<2x1xf32>
    %39 = arith.addf %32, %38 : vector<2x1xf32>
    %40 = vector.broadcast %39 : vector<2x1xf32> to vector<2x8xf32>
    %41 = arith.subf %30, %40 : vector<2x8xf32>
    %c0_25 = arith.constant 0 : index
    %c0_26 = arith.constant 0 : index
    %42 = vector.load %arg7[%c0_25, %c0_26] : memref<2x8xf32, #tpu.memory_space<vmem>>, vector<2x8xf32>
    tpu.vector_store %arg7[%c0_25, %c0_26], %41 {strides = array<i32>} : memref<2x8xf32, #tpu.memory_space<vmem>>, vector<2x8xf32>,
    return
  }
  func.func @transform_0(%arg0: i32) -> (i32, i32) {
    %c0_i32 = arith.constant 0 : i32
    %c0_i32_0 = arith.constant 0 : i32
    %c0_i32_1 = arith.constant 0 : i32
    return %c0_i32, %c0_i32_0 : i32, i32
  }
  func.func @transform_1(%arg0: i32) -> (i32, i32) {
    %c0_i32 = arith.constant 0 : i32
    %c0_i32_0 = arith.constant 0 : i32
    %c0_i32_1 = arith.constant 0 : i32
    return %c0_i32, %c0_i32_0 : i32, i32
  }
  func.func @transform_2(%arg0: i32) -> (i32, i32) {
    %c0_i32 = arith.constant 0 : i32
    %c0_i32_0 = arith.constant 0 : i32
    %c0_i32_1 = arith.constant 0 : i32
    return %c0_i32, %c0_i32_0 : i32, i32
  }
  func.func @transform_3(%arg0: i32) -> (i32, i32) {
    %c0_i32 = arith.constant 0 : i32
    %c0_i32_0 = arith.constant 0 : i32
    %c0_i32_1 = arith.constant 0 : i32
    return %c0_i32, %c0_i32_0 : i32, i32
  }
  func.func @transform_4(%arg0: i32) -> (i32, i32, i32) {
    %c0_i32 = arith.constant 0 : i32
    %c0_i32_0 = arith.constant 0 : i32
    %c0_i32_1 = arith.constant 0 : i32
    %c0_i32_2 = arith.constant 0 : i32
    return %c0_i32, %c0_i32_0, %c0_i32_1 : i32, i32, i32
  }
  func.func @transform_5(%arg0: i32) -> (i32, i32) {
    %c0_i32 = arith.constant 0 : i32
    %c0_i32_0 = arith.constant 0 : i32
    %c0_i32_1 = arith.constant 0 : i32
    return %c0_i32, %c0_i32_0 : i32, i32
  }
  func.func @transform_6(%arg0: i32) -> (i32, i32) {
    %c0_i32 = arith.constant 0 : i32
    %c0_i32_0 = arith.constant 0 : i32
    %c0_i32_1 = arith.constant 0 : i32
    return %c0_i32, %c0_i32_0 : i32, i32
  }
}

</mosaic_0001>

<llo_original>
// kernel: tpu_custom_call.1
$region0: #{tpu_custom_call.1}
  #allocation0 [shape = 'u32[]', space=smem, size = 0x4, offset = 0x4, fixed_abs, tag = 'smem constant byte address 0x4 - core index']
  #allocation1 [shape = 'u32[144,128]{1,0:T(1,128)}', space=vmem, size = 0x12000, scoped, tag = 'internal scratch']
  %s0 = inlined_call_operand.vmem [shape: f32[72,32], index: 0, kind: input, shape index: {}]
  %s1 = inlined_call_operand.vmem [shape: f32[160,128], index: 1, kind: input, shape index: {}]
  %s2 = inlined_call_operand.vmem [shape: f32[1,128], index: 2, kind: input, shape index: {}]
  %s3 = inlined_call_operand.vmem [shape: f32[16,128], index: 3, kind: input, shape index: {}]
  %s4 = inlined_call_operand.vmem [shape: f32[2,128,8], index: 4, kind: input, shape index: {}]
  %s5 = inlined_call_operand.vmem [shape: f32[1,8], index: 5, kind: input, shape index: {}]
  %s6 = inlined_call_operand.hbm [shape: f32[2,8], index: 6, kind: output, shape index: {}]
  %s7 = sld [smem:[#allocation0]]
  $region34: #{tpu_custom_call.1} parent=0
    _
  %s9 = ssub.s32 1, %s7
  %s10 = scalar_select 0, %s9, %s7
  $region1: #{tpu_custom_call.1} parent=0
    #allocation2 [shape = 'u8[1024]{0}', space=vmem, size = 0x400, scoped, tag = 'output window, operand 0, single buffered']
    #allocation3 [shape = 's32[1]{0}', space=sflag, size = 0x4, scoped, tag = 'scoped memory for tpu_custom_call.1']
    %11 = vsyncpa [#allocation3], 0
    // Predicated region
    $region2: #{tpu_custom_call.1} parent=1 // pred_check
      _
    $region3: #{tpu_custom_call.1} parent=1 // pred_check_branch
      %13 = sbr.rel (0) target = $region5
    $region4: #{tpu_custom_call.1} parent=1 // pred_region
      _
    $region5: #{tpu_custom_call.1} parent=1 // pred_fallthru
      _
    // Predicated region
    $region6: #{tpu_custom_call.1} parent=1 // pred_check
      _
    $region7: #{tpu_custom_call.1} parent=1 // pred_check_branch
      %15 = sbr.rel (0) target = $region9
    $region8: #{tpu_custom_call.1} parent=1 // pred_region
      _
    $region9: #{tpu_custom_call.1} parent=1 // pred_fallthru
      _
    // Predicated region
    $region10: #{tpu_custom_call.1} parent=1 // pred_check
      _
    $region11: #{tpu_custom_call.1} parent=1 // pred_check_branch
      %17 = sbr.rel (0) target = $region13
    $region12: #{tpu_custom_call.1} parent=1 // pred_region
      _
    $region13: #{tpu_custom_call.1} parent=1 // pred_fallthru
      _
    // Predicated region
    $region14: #{tpu_custom_call.1} parent=1 // pred_check
      _
    $region15: #{tpu_custom_call.1} parent=1 // pred_check_branch
      %19 = sbr.rel (0) target = $region17
    $region16: #{tpu_custom_call.1} parent=1 // pred_region
      _
    $region17: #{tpu_custom_call.1} parent=1 // pred_fallthru
      _
    // Predicated region
    $region18: #{tpu_custom_call.1} parent=1 // pred_check
      _
    $region19: #{tpu_custom_call.1} parent=1 // pred_check_branch
      %21 = sbr.rel (0) target = $region21
    $region20: #{tpu_custom_call.1} parent=1 // pred_region
      _
    $region21: #{tpu_custom_call.1} parent=1 // pred_fallthru
      _
    // Predicated region
    $region22: #{tpu_custom_call.1} parent=1 // pred_check
      _
    $region23: #{tpu_custom_call.1} parent=1 // pred_check_branch
      %23 = sbr.rel (0) target = $region25
    $region24: #{tpu_custom_call.1} parent=1 // pred_region
      _
    $region25: #{tpu_custom_call.1} parent=1 // pred_fallthru
      _
    %v24 = vld [vmem:[%s0] sm:$0xff]
    %v25 = vld [vmem:[%s0 + $0x8] sm:$0xff]
    %v26 = vld [vmem:[%s0 + $0x10] sm:$0xff]
    %v27 = vld [vmem:[%s0 + $0x18] sm:$0xff]
    %v28 = vld [vmem:[%s0 + $0x20] sm:$0xff]
    %v29 = vld [vmem:[%s0 + $0x28] sm:$0xff]
    %v30 = vld [vmem:[%s0 + $0x30] sm:$0xff]
    %v31 = vld [vmem:[%s0 + $0x38] sm:$0xff]
    %v32 = vld [vmem:[%s0 + $0x1] sm:$0xff]
    %v33 = vld [vmem:[%s0 + $0x9] sm:$0xff]
    %v34 = vld [vmem:[%s0 + $0x11] sm:$0xff]
    %v35 = vld [vmem:[%s0 + $0x19] sm:$0xff]
    %v36 = vld [vmem:[%s0 + $0x21] sm:$0xff]
    %v37 = vld [vmem:[%s0 + $0x29] sm:$0xff]
    %v38 = vld [vmem:[%s0 + $0x31] sm:$0xff]
    %v39 = vld [vmem:[%s0 + $0x39] sm:$0xff]
    %v40 = vld [vmem:[%s0 + $0x2] sm:$0xff]
    %v41 = vld [vmem:[%s0 + $0xa] sm:$0xff]
    %v42 = vld [vmem:[%s0 + $0x12] sm:$0xff]
    %v43 = vld [vmem:[%s0 + $0x1a] sm:$0xff]
    %v44 = vld [vmem:[%s0 + $0x22] sm:$0xff]
    %v45 = vld [vmem:[%s0 + $0x2a] sm:$0xff]
    %v46 = vld [vmem:[%s0 + $0x32] sm:$0xff]
    %v47 = vld [vmem:[%s0 + $0x3a] sm:$0xff]
    %v48 = vld [vmem:[%s0 + $0x3] sm:$0xff]
    %v49 = vld [vmem:[%s0 + $0xb] sm:$0xff]
    %v50 = vld [vmem:[%s0 + $0x13] sm:$0xff]
    %v51 = vld [vmem:[%s0 + $0x1b] sm:$0xff]
    %v52 = vld [vmem:[%s0 + $0x23] sm:$0xff]
    %v53 = vld [vmem:[%s0 + $0x2b] sm:$0xff]
    %v54 = vld [vmem:[%s0 + $0x33] sm:$0xff]
    %v55 = vld [vmem:[%s0 + $0x3b] sm:$0xff]
    %v56 = vld [vmem:[%s0 + $0x4] sm:$0xff]
    %v57 = vld [vmem:[%s0 + $0xc] sm:$0xff]
    %v58 = vld [vmem:[%s0 + $0x14] sm:$0xff]
    %v59 = vld [vmem:[%s0 + $0x1c] sm:$0xff]
    %v60 = vld [vmem:[%s0 + $0x24] sm:$0xff]
    %v61 = vld [vmem:[%s0 + $0x2c] sm:$0xff]
    %v62 = vld [vmem:[%s0 + $0x34] sm:$0xff]
    %v63 = vld [vmem:[%s0 + $0x3c] sm:$0xff]
    %72 = vrot.lane.b32.xlu0 %v32, 32
    %v73 = vpop.permute.xlu0 %72
    %74 = vrot.lane.b32.xlu0 %v33, 32
    %v75 = vpop.permute.xlu0 %74
    %76 = vrot.lane.b32.xlu0 %v34, 32
    %v77 = vpop.permute.xlu0 %76
    %78 = vrot.lane.b32.xlu0 %v35, 32
    %v79 = vpop.permute.xlu0 %78
    %80 = vrot.lane.b32.xlu0 %v36, 32
    %v81 = vpop.permute.xlu0 %80
    %82 = vrot.lane.b32.xlu0 %v37, 32
    %v83 = vpop.permute.xlu0 %82
    %84 = vrot.lane.b32.xlu0 %v38, 32
    %v85 = vpop.permute.xlu0 %84
    %86 = vrot.lane.b32.xlu0 %v39, 32
    %v87 = vpop.permute.xlu0 %86
    %104 = vrot.lane.b32.xlu0 %v40, 64
    %v105 = vpop.permute.xlu0 %104
    %106 = vrot.lane.b32.xlu0 %v41, 64
    %v107 = vpop.permute.xlu0 %106
    %108 = vrot.lane.b32.xlu0 %v42, 64
    %v109 = vpop.permute.xlu0 %108
    %110 = vrot.lane.b32.xlu0 %v43, 64
    %v111 = vpop.permute.xlu0 %110
    %112 = vrot.lane.b32.xlu0 %v44, 64
    %v113 = vpop.permute.xlu0 %112
    %114 = vrot.lane.b32.xlu0 %v45, 64
    %v115 = vpop.permute.xlu0 %114
    %116 = vrot.lane.b32.xlu0 %v46, 64
    %v117 = vpop.permute.xlu0 %116
    %118 = vrot.lane.b32.xlu0 %v47, 64
    %v119 = vpop.permute.xlu0 %118
    %136 = vrot.lane.b32.xlu0 %v48, 96
    %v137 = vpop.permute.xlu0 %136
    %138 = vrot.lane.b32.xlu0 %v49, 96
    %v139 = vpop.permute.xlu0 %138
    %140 = vrot.lane.b32.xlu0 %v50, 96
    %v141 = vpop.permute.xlu0 %140
    %142 = vrot.lane.b32.xlu0 %v51, 96
    %v143 = vpop.permute.xlu0 %142
    %144 = vrot.lane.b32.xlu0 %v52, 96
    %v145 = vpop.permute.xlu0 %144
    %146 = vrot.lane.b32.xlu0 %v53, 96
    %v147 = vpop.permute.xlu0 %146
    %148 = vrot.lane.b32.xlu0 %v54, 96
    %v149 = vpop.permute.xlu0 %148
    %150 = vrot.lane.b32.xlu0 %v55, 96
    %v151 = vpop.permute.xlu0 %150
    %vm160 = vcmask 261120
    %v161 = vsel %vm160, %v24, %v73
    %v162 = vsel %vm160, %v25, %v75
    %v163 = vsel %vm160, %v26, %v77
    %v164 = vsel %vm160, %v27, %v79
    %v165 = vsel %vm160, %v28, %v81
    %v166 = vsel %vm160, %v29, %v83
    %v167 = vsel %vm160, %v30, %v85
    %v168 = vsel %vm160, %v31, %v87
    %vm169 = vcmask 523264
    %v170 = vsel %vm169, %v161, %v105
    %v171 = vsel %vm169, %v162, %v107
    %v172 = vsel %vm169, %v163, %v109
    %v173 = vsel %vm169, %v164, %v111
    %v174 = vsel %vm169, %v165, %v113
    %v175 = vsel %vm169, %v166, %v115
    %v176 = vsel %vm169, %v167, %v117
    %v177 = vsel %vm169, %v168, %v119
    %vm178 = vcmask 785408
    %v179 = vsel %vm178, %v170, %v137
    %v180 = vsel %vm178, %v171, %v139
    %v181 = vsel %vm178, %v172, %v141
    %v182 = vsel %vm178, %v173, %v143
    %v183 = vsel %vm178, %v174, %v145
    %v184 = vsel %vm178, %v175, %v147
    %v185 = vsel %vm178, %v176, %v149
    %v186 = vsel %vm178, %v177, %v151
    %v187 = vld [vmem:[%s1] sm:$0xff]
    %v188 = vld [vmem:[%s1 + $0x8] sm:$0xff]
    %v189 = vld [vmem:[%s1 + $0x10] sm:$0xff]
    %v190 = vld [vmem:[%s1 + $0x18] sm:$0xff]
    %v191 = vld [vmem:[%s1 + $0x20] sm:$0xff]
    %v192 = vld [vmem:[%s1 + $0x28] sm:$0xff]
    %v193 = vld [vmem:[%s1 + $0x30] sm:$0xff]
    %v194 = vld [vmem:[%s1 + $0x38] sm:$0xff]
    %v195 = vld [vmem:[%s1 + $0x40] sm:$0xff]
    %v196 = vld [vmem:[%s1 + $0x48] sm:$0xff]
    %v197 = vld [vmem:[%s1 + $0x50] sm:$0xff]
    %v198 = vld [vmem:[%s1 + $0x58] sm:$0xff]
    %v199 = vld [vmem:[%s1 + $0x60] sm:$0xff]
    %v200 = vld [vmem:[%s1 + $0x68] sm:$0xff]
    %v201 = vld [vmem:[%s1 + $0x70] sm:$0xff]
    %v202 = vld [vmem:[%s1 + $0x78] sm:$0xff]
    %v203 = vld [vmem:[%s1 + $0x80] sm:$0xff]
    %v204 = vld [vmem:[%s1 + $0x88] sm:$0xff]
    %v205 = vld [vmem:[%s1 + $0x90] sm:$0xff]
    %v206 = vld [vmem:[%s1 + $0x98] sm:$0xff]
    %v208 = vsel %vm160, %v56, 0
    %v211 = vsel %vm160, %v57, 0
    %v214 = vsel %vm160, %v58, 0
    %v217 = vsel %vm160, %v59, 0
    %v220 = vsel %vm160, %v60, 0
    %v223 = vsel %vm160, %v61, 0
    %v226 = vsel %vm160, %v62, 0
    %v229 = vsel %vm160, %v63, 0
    %231 = vmatprep.subr.mxu0 0.0
    %232 = vmatpush1.msra.mxu0 %v187
    %233 = vmatprep.subr.mxu0 0.0
    %234 = vmatpush1.msra.mxu0 %v188
    %235 = vmatprep.subr.mxu0 0.0
    %236 = vmatpush1.msra.mxu0 %v189
    %237 = vmatprep.subr.mxu0 0.0
    %238 = vmatpush1.msra.mxu0 %v190
    %239 = vmatprep.subr.mxu0 0.0
    %240 = vmatpush1.msra.mxu0 %v191
    %241 = vmatprep.subr.mxu0 0.0
    %242 = vmatpush1.msra.mxu0 %v192
    %243 = vmatprep.subr.mxu0 0.0
    %244 = vmatpush1.msra.mxu0 %v193
    %245 = vmatprep.subr.mxu0 0.0
    %246 = vmatpush1.msra.mxu0 %v194
    %247 = vmatprep.subr.mxu0 0.0
    %248 = vmatpush1.msra.mxu0 %v195
    %249 = vmatprep.subr.mxu0 0.0
    %250 = vmatpush1.msra.mxu0 %v196
    %251 = vmatprep.subr.mxu0 0.0
    %252 = vmatpush1.msra.mxu0 %v197
    %253 = vmatprep.subr.mxu0 0.0
    %254 = vmatpush1.msra.mxu0 %v198
    %255 = vmatprep.subr.mxu0 0.0
    %256 = vmatpush1.msra.mxu0 %v199
    %257 = vmatprep.subr.mxu0 0.0
    %258 = vmatpush1.msra.mxu0 %v200
    %259 = vmatprep.subr.mxu0 0.0
    %260 = vmatpush1.msra.mxu0 %v201
    %261 = vmatprep.subr.mxu0 0.0
    %262 = vmatpush1.msra.mxu0 %v202
    %263 = vmatprep.subr.mxu0 0.0
    %264 = vmatpush1.msra.mxu0 %v203
    %265 = vmatprep.subr.mxu0 0.0
    %266 = vmatpush1.msra.mxu0 %v204
    %267 = vmatprep.subr.mxu0 0.0
    %268 = vmatpush1.msra.mxu0 %v205
    %269 = vmatprep.subr.mxu0 0.0
    %270 = vmatpush1.msra.mxu0 %v206
    %271 = vmatprep.subr.mxu0 0.0
    %272 = vmatpush1.msra.mxu0 0.0
    %273 = vmatprep.subr.mxu0 0.0
    %274 = vmatpush1.msra.mxu0 0.0
    %275 = vmatprep.subr.mxu0 0.0
    %276 = vmatpush1.msra.mxu0 0.0
    %277 = vmatprep.subr.mxu0 0.0
    %278 = vmatpush1.msra.mxu0 0.0
    %279 = vmatprep.subr.mxu0 0.0
    %280 = vmatpush1.msra.mxu0 0.0
    %281 = vmatprep.subr.mxu0 0.0
    %282 = vmatpush1.msra.mxu0 0.0
    %283 = vmatprep.subr.mxu0 0.0
    %284 = vmatpush1.msra.mxu0 0.0
    %285 = vmatprep.subr.mxu0 0.0
    %286 = vmatpush1.msra.mxu0 0.0
    %287 = vmatprep.subr.mxu0 0.0
    %288 = vmatpush1.msra.mxu0 0.0
    %289 = vmatprep.subr.mxu0 0.0
    %290 = vmatpush1.msra.mxu0 0.0
    %291 = vmatprep.subr.mxu0 0.0
    %292 = vmatpush1.msra.mxu0 0.0
    %293 = vmatprep.subr.mxu0 0.0
    %294 = vmatpush1.msra.mxu0 0.0
    %295 = vmatprep.mubr.f32.mxu0 %v208
    %296 = vmatmul.mubr.f32.gmra.mrb[0].mxu0 %v179
    %v297 = vpop.f32.mrb[0].mxu0
    %v298 = vadd.f32 0.0, %v297
    %v299 = vpop.f32.mrb[0].mxu0
    %300 = vmatprep.mubr.f32.mxu0 %v211
    %301 = vmatmul.mubr.f32.gmra.mrb[0].mxu0 %v180
    %v302 = vpop.f32.mrb[0].mxu0
    %v303 = vadd.f32 0.0, %v302
    %v304 = vpop.f32.mrb[0].mxu0
    %305 = vmatprep.mubr.f32.mxu0 %v214
    %306 = vmatmul.mubr.f32.gmra.mrb[0].mxu0 %v181
    %v307 = vpop.f32.mrb[0].mxu0
    %v308 = vadd.f32 0.0, %v307
    %v309 = vpop.f32.mrb[0].mxu0
    %310 = vmatprep.mubr.f32.mxu0 %v217
    %311 = vmatmul.mubr.f32.gmra.mrb[0].mxu0 %v182
    %v312 = vpop.f32.mrb[0].mxu0
    %v313 = vadd.f32 0.0, %v312
    %v314 = vpop.f32.mrb[0].mxu0
    %315 = vmatprep.mubr.f32.mxu0 %v220
    %316 = vmatmul.mubr.f32.gmra.mrb[0].mxu0 %v183
    %v317 = vpop.f32.mrb[0].mxu0
    %v318 = vadd.f32 0.0, %v317
    %v319 = vpop.f32.mrb[0].mxu0
    %320 = vmatprep.mubr.f32.mxu0 %v223
    %321 = vmatmul.mubr.f32.gmra.mrb[0].mxu0 %v184
    %v322 = vpop.f32.mrb[0].mxu0
    %v323 = vadd.f32 0.0, %v322
    %v324 = vpop.f32.mrb[0].mxu0
    %325 = vmatprep.mubr.f32.mxu0 %v226
    %326 = vmatmul.mubr.f32.gmra.mrb[0].mxu0 %v185
    %v327 = vpop.f32.mrb[0].mxu0
    %v328 = vadd.f32 0.0, %v327
    %v329 = vpop.f32.mrb[0].mxu0
    %330 = vmatprep.mubr.f32.mxu0 %v229
    %331 = vmatmul.mubr.f32.gmra.mrb[0].mxu0 %v186
    %v332 = vpop.f32.mrb[0].mxu0
    %v333 = vadd.f32 0.0, %v332
    %v334 = vpop.f32.mrb[0].mxu0
    %335 = vdwg.mxu0
    %v336 = vld [vmem:[%s3] sm:$0xff]
    %v337 = vld [vmem:[%s3 + $0x8] sm:$0xff]
    %v338 = vadd.f32 %v298, %v336
    %v339 = vadd.f32 %v303, %v337
    %v340 = vadd.f32 %v308, %v336
    %v341 = vadd.f32 %v313, %v337
    %v342 = vadd.f32 %v318, %v336
    %v343 = vadd.f32 %v323, %v337
    %v344 = vadd.f32 %v328, %v336
    %v345 = vadd.f32 %v333, %v337
    %v346 = vmax.f32 %v338, %v339
    %v347 = vrot.slane %v346, 4
    %v348 = vmax.f32 %v346, %v347
    %v349 = vrot.slane %v348, 2
    %v350 = vmax.f32 %v348, %v349
    %v351 = vrot.slane %v350, 1
    %v352 = vmax.f32 %v350, %v351
    %v353 = vmax.f32 %v340, %v341
    %v354 = vrot.slane %v353, 4
    %v355 = vmax.f32 %v353, %v354
    %v356 = vrot.slane %v355, 2
    %v357 = vmax.f32 %v355, %v356
    %v358 = vrot.slane %v357, 1
    %v359 = vmax.f32 %v357, %v358
    %v360 = vmax.f32 %v342, %v343
    %v361 = vrot.slane %v360, 4
    %v362 = vmax.f32 %v360, %v361
    %v363 = vrot.slane %v362, 2
    %v364 = vmax.f32 %v362, %v363
    %v365 = vrot.slane %v364, 1
    %v366 = vmax.f32 %v364, %v365
    %v367 = vmax.f32 %v344, %v345
    %v368 = vrot.slane %v367, 4
    %v369 = vmax.f32 %v367, %v368
    %v370 = vrot.slane %v369, 2
    %v371 = vmax.f32 %v369, %v370
    %v372 = vrot.slane %v371, 1
    %v373 = vmax.f32 %v371, %v372
    %v374 = vld [vmem:[%s2] sm:$0x1]
    %v376 = vlaneseq
    %v377 = vshrl.u32 %v376, 7
    %v378 = vsub.s32 0, %v377
    %v379 = vrot.slane %v374, %v378
    %v381 = vadd.f32 %v352, %v379
    %v382 = vadd.f32 %v359, %v379
    %v383 = vadd.f32 %v366, %v379
    %v384 = vadd.f32 %v373, %v379
    %v385 = vmax.f32 %v381, 0.0
    %v386 = vmax.f32 %v382, 0.0
    %v387 = vmax.f32 %v383, 0.0
    %v388 = vmax.f32 %v384, 0.0
    %v389 = vld [vmem:[%s4] sm:$0xff]
    %v390 = vld [vmem:[%s4 + $0x8] sm:$0xff]
    %v391 = vld [vmem:[%s4 + $0x10] sm:$0xff]
    %v392 = vld [vmem:[%s4 + $0x18] sm:$0xff]
    %v393 = vld [vmem:[%s4 + $0x20] sm:$0xff]
    %v394 = vld [vmem:[%s4 + $0x28] sm:$0xff]
    %v395 = vld [vmem:[%s4 + $0x30] sm:$0xff]
    %v396 = vld [vmem:[%s4 + $0x38] sm:$0xff]
    %v397 = vld [vmem:[%s4 + $0x40] sm:$0xff]
    %v398 = vld [vmem:[%s4 + $0x48] sm:$0xff]
    %v399 = vld [vmem:[%s4 + $0x50] sm:$0xff]
    %v400 = vld [vmem:[%s4 + $0x58] sm:$0xff]
    %v401 = vld [vmem:[%s4 + $0x60] sm:$0xff]
    %v402 = vld [vmem:[%s4 + $0x68] sm:$0xff]
    %v403 = vld [vmem:[%s4 + $0x70] sm:$0xff]
    %v404 = vld [vmem:[%s4 + $0x78] sm:$0xff]
    %s405 = scalar_lea.vmem %s4, 128
    %v406 = vld [vmem:[%s405] sm:$0xff]
    %v407 = vld [vmem:[%s405 + $0x8] sm:$0xff]
    %v408 = vld [vmem:[%s405 + $0x10] sm:$0xff]
    %v409 = vld [vmem:[%s405 + $0x18] sm:$0xff]
    %v410 = vld [vmem:[%s405 + $0x20] sm:$0xff]
    %v411 = vld [vmem:[%s405 + $0x28] sm:$0xff]
    %v412 = vld [vmem:[%s405 + $0x30] sm:$0xff]
    %v413 = vld [vmem:[%s405 + $0x38] sm:$0xff]
    %v414 = vld [vmem:[%s405 + $0x40] sm:$0xff]
    %v415 = vld [vmem:[%s405 + $0x48] sm:$0xff]
    %v416 = vld [vmem:[%s405 + $0x50] sm:$0xff]
    %v417 = vld [vmem:[%s405 + $0x58] sm:$0xff]
    %v418 = vld [vmem:[%s405 + $0x60] sm:$0xff]
    %v419 = vld [vmem:[%s405 + $0x68] sm:$0xff]
    %v420 = vld [vmem:[%s405 + $0x70] sm:$0xff]
    %v421 = vld [vmem:[%s405 + $0x78] sm:$0xff]
    %v424 = vrot.slane %v388, 7
    %vm425 = vcmask 1041409
    %v426 = vsel %vm425, %v424, %v387
    %428 = vmatprep.subr.mxu0 0.0
    %429 = vmatpush1.msra.mxu0 %v406
    %430 = vmatprep.subr.mxu0 0.0
    %431 = vmatpush1.msra.mxu0 %v407
    %432 = vmatprep.subr.mxu0 0.0
    %433 = vmatpush1.msra.mxu0 %v408
    %434 = vmatprep.subr.mxu0 0.0
    %435 = vmatpush1.msra.mxu0 %v409
    %436 = vmatprep.subr.mxu0 0.0
    %437 = vmatpush1.msra.mxu0 %v410
    %438 = vmatprep.subr.mxu0 0.0
    %439 = vmatpush1.msra.mxu0 %v411
    %440 = vmatprep.subr.mxu0 0.0
    %441 = vmatpush1.msra.mxu0 %v412
    %442 = vmatprep.subr.mxu0 0.0
    %443 = vmatpush1.msra.mxu0 %v413
    %444 = vmatprep.subr.mxu0 0.0
    %445 = vmatpush1.msra.mxu0 %v414
    %446 = vmatprep.subr.mxu0 0.0
    %447 = vmatpush1.msra.mxu0 %v415
    %448 = vmatprep.subr.mxu0 0.0
    %449 = vmatpush1.msra.mxu0 %v416
    %450 = vmatprep.subr.mxu0 0.0
    %451 = vmatpush1.msra.mxu0 %v417
    %452 = vmatprep.subr.mxu0 0.0
    %453 = vmatpush1.msra.mxu0 %v418
    %454 = vmatprep.subr.mxu0 0.0
    %455 = vmatpush1.msra.mxu0 %v419
    %456 = vmatprep.subr.mxu0 0.0
    %457 = vmatpush1.msra.mxu0 %v420
    %458 = vmatprep.subr.mxu0 0.0
    %459 = vmatpush1.msra.mxu0 %v421
    %460 = vmatprep.subr.mxu0 0.0
    %461 = vmatpush1.msra.mxu0 0.0
    %462 = vmatprep.subr.mxu0 0.0
    %463 = vmatpush1.msra.mxu0 0.0
    %464 = vmatprep.subr.mxu0 0.0
    %465 = vmatpush1.msra.mxu0 0.0
    %466 = vmatprep.subr.mxu0 0.0
    %467 = vmatpush1.msra.mxu0 0.0
    %468 = vmatprep.subr.mxu0 0.0
    %469 = vmatpush1.msra.mxu0 0.0
    %470 = vmatprep.subr.mxu0 0.0
    %471 = vmatpush1.msra.mxu0 0.0
    %472 = vmatprep.subr.mxu0 0.0
    %473 = vmatpush1.msra.mxu0 0.0
    %474 = vmatprep.subr.mxu0 0.0
    %475 = vmatpush1.msra.mxu0 0.0
    %476 = vmatprep.subr.mxu0 0.0
    %477 = vmatpush1.msra.mxu0 0.0
    %478 = vmatprep.subr.mxu0 0.0
    %479 = vmatpush1.msra.mxu0 0.0
    %480 = vmatprep.subr.mxu0 0.0
    %481 = vmatpush1.msra.mxu0 0.0
    %482 = vmatprep.subr.mxu0 0.0
    %483 = vmatpush1.msra.mxu0 0.0
    %484 = vmatprep.subr.mxu0 0.0
    %485 = vmatpush1.msra.mxu0 0.0
    %486 = vmatprep.subr.mxu0 0.0
    %487 = vmatpush1.msra.mxu0 0.0
    %488 = vmatprep.subr.mxu0 0.0
    %489 = vmatpush1.msra.mxu0 0.0
    %490 = vmatprep.subr.mxu0 0.0
    %491 = vmatpush1.msra.mxu0 0.0
    %492 = vmatprep.mubr.f32.mxu0 0.0
    %493 = vmatmul.mubr.f32.gmra.mrb[0].mxu0 %v426
    %v494 = vpop.f32.mrb[0].mxu0
    %v495 = vadd.f32 0.0, %v494
    %v496 = vpop.f32.mrb[0].mxu0
    %497 = vdwg.mxu0
    %v500 = vrot.slane %v386, 7
    %v501 = vsel %vm425, %v500, %v385
    %503 = vmatprep.subr.mxu0 0.0
    %504 = vmatpush1.msra.mxu0 %v389
    %505 = vmatprep.subr.mxu0 0.0
    %506 = vmatpush1.msra.mxu0 %v390
    %507 = vmatprep.subr.mxu0 0.0
    %508 = vmatpush1.msra.mxu0 %v391
    %509 = vmatprep.subr.mxu0 0.0
    %510 = vmatpush1.msra.mxu0 %v392
    %511 = vmatprep.subr.mxu0 0.0
    %512 = vmatpush1.msra.mxu0 %v393
    %513 = vmatprep.subr.mxu0 0.0
    %514 = vmatpush1.msra.mxu0 %v394
    %515 = vmatprep.subr.mxu0 0.0
    %516 = vmatpush1.msra.mxu0 %v395
    %517 = vmatprep.subr.mxu0 0.0
    %518 = vmatpush1.msra.mxu0 %v396
    %519 = vmatprep.subr.mxu0 0.0
    %520 = vmatpush1.msra.mxu0 %v397
    %521 = vmatprep.subr.mxu0 0.0
    %522 = vmatpush1.msra.mxu0 %v398
    %523 = vmatprep.subr.mxu0 0.0
    %524 = vmatpush1.msra.mxu0 %v399
    %525 = vmatprep.subr.mxu0 0.0
    %526 = vmatpush1.msra.mxu0 %v400
    %527 = vmatprep.subr.mxu0 0.0
    %528 = vmatpush1.msra.mxu0 %v401
    %529 = vmatprep.subr.mxu0 0.0
    %530 = vmatpush1.msra.mxu0 %v402
    %531 = vmatprep.subr.mxu0 0.0
    %532 = vmatpush1.msra.mxu0 %v403
    %533 = vmatprep.subr.mxu0 0.0
    %534 = vmatpush1.msra.mxu0 %v404
    %535 = vmatprep.subr.mxu0 0.0
    %536 = vmatpush1.msra.mxu0 0.0
    %537 = vmatprep.subr.mxu0 0.0
    %538 = vmatpush1.msra.mxu0 0.0
    %539 = vmatprep.subr.mxu0 0.0
    %540 = vmatpush1.msra.mxu0 0.0
    %541 = vmatprep.subr.mxu0 0.0
    %542 = vmatpush1.msra.mxu0 0.0
    %543 = vmatprep.subr.mxu0 0.0
    %544 = vmatpush1.msra.mxu0 0.0
    %545 = vmatprep.subr.mxu0 0.0
    %546 = vmatpush1.msra.mxu0 0.0
    %547 = vmatprep.subr.mxu0 0.0
    %548 = vmatpush1.msra.mxu0 0.0
    %549 = vmatprep.subr.mxu0 0.0
    %550 = vmatpush1.msra.mxu0 0.0
    %551 = vmatprep.subr.mxu0 0.0
    %552 = vmatpush1.msra.mxu0 0.0
    %553 = vmatprep.subr.mxu0 0.0
    %554 = vmatpush1.msra.mxu0 0.0
    %555 = vmatprep.subr.mxu0 0.0
    %556 = vmatpush1.msra.mxu0 0.0
    %557 = vmatprep.subr.mxu0 0.0
    %558 = vmatpush1.msra.mxu0 0.0
    %559 = vmatprep.subr.mxu0 0.0
    %560 = vmatpush1.msra.mxu0 0.0
    %561 = vmatprep.subr.mxu0 0.0
    %562 = vmatpush1.msra.mxu0 0.0
    %563 = vmatprep.subr.mxu0 0.0
    %564 = vmatpush1.msra.mxu0 0.0
    %565 = vmatprep.subr.mxu0 0.0
    %566 = vmatpush1.msra.mxu0 0.0
    %567 = vmatprep.mubr.f32.mxu0 0.0
    %568 = vmatmul.mubr.f32.gmra.mrb[0].mxu0 %v501
    %v569 = vpop.f32.mrb[0].mxu0
    %v570 = vadd.f32 %v495, %v569
    %v571 = vpop.f32.mrb[0].mxu0
    %572 = vdwg.mxu0
    %v573 = vld [vmem:[%s5] sm:$0x1]
    %v575 = vlaneseq
    %v576 = vshrl.u32 %v575, 7
    %v577 = vsub.s32 0, %v576
    %v578 = vrot.slane %v573, %v577
    %v580 = vadd.f32 %v570, %v578
    %vm581 = vcmask 58368
    %v582 = vsel %vm581, %v580, -inf
    %583 = vmax.xlane.f32.xlu0 %v582
    %v584 = vpop.xlane.xlu0 %583
    %v585 = vsub.f32 %v580, %v584
    %v586 = vmul.f32 %v585, 1.442695
    %v587 = vpow.pop %v586
    %v588 = vsel %vm581, %v587, 0.0
    %589 = vadd.xlane.f32.xlu0 %v588
    %v590 = vpop.xlane.xlu0 %589
    %v591 = vlog2.pop %v590
    %v592 = vmul.f32 %v591, 0.6931472
    %v593 = vadd.f32 %v584, %v592
    %v594 = vsub.f32 %v580, %v593
    %595 = vst.msk [vmem:[#allocation2] sm:$0x3] %vm581, %v594
    // Predicated region
    $region26: #{tpu_custom_call.1} parent=1 // pred_check
      _
    $region27: #{tpu_custom_call.1} parent=1 // pred_check_branch
      %597 = sbr.rel (0) target = $region29
    $region28: #{tpu_custom_call.1} parent=1 // pred_region
      %s599 = ssub.s32 32, 32
      %600 = vsyncadd [#allocation3], %s599
      %s602 = sshll.u32 [#allocation2], 4
      %s603 = int_to_ptr.vmem [resolvable:$true] %s602
      %605 = dma.vmem_to_hbm [thread:$0]  %s603, 32, %s6, [#allocation3]
    $region29: #{tpu_custom_call.1} parent=1 // pred_fallthru
      _
    // Predicated region
    $region30: #{tpu_custom_call.1} parent=1 // pred_check
      _
    $region31: #{tpu_custom_call.1} parent=1 // pred_check_branch
      %607 = sbr.rel (0) target = $region33
    $region32: #{tpu_custom_call.1} parent=1 // pred_region
      %608 = dma.done [#allocation3], 32
    $region33: #{tpu_custom_call.1} parent=1 // pred_fallthru
      _
    %609 = vsyncpa [#allocation3], 1

</llo_original>
